<compile_context>
chip_gen: v5e
topology: v5e:2x2
jax: 0.10.0
libtpu: 0.0.40
codegen_flags: <defaults>
</compile_context>

<pallas_src>
import math

import jax
import jax.numpy as jnp
from jax.experimental import pallas as pl
from jax.experimental.pallas import tpu as pltpu

IN_FEATURES = 2
OUT_FEATURES = 4
HBLK = 128                      # h-block width (one 128-lane group)


def _fused_matrix(weight, h, dtype):
    """(2h, 4h) matrix M[i*2+f, o*h+j] = W[o, f] * (i == j); fuses F.linear
    with permute(0, 1, 3, 2) for an h-wide block of the H axis."""
    eye = jnp.eye(h, dtype=dtype)
    return (weight.astype(dtype).T[None, :, :, None]
            * eye[:, None, None, :]).reshape(IN_FEATURES * h, OUT_FEATURES * h)


def _vmem_limit_bytes():
    """Generation-aware scoped-VMEM limit (headroom under physical VMEM)."""
    cap = 64 * 1024 * 1024                        # conservative default (v7x)
    try:
        cap = int(getattr(pltpu.get_tpu_info(), "vmem_capacity_bytes", cap))
    except Exception:
        pass
    if cap >= 96 * 1024 * 1024:                   # v5e / v6e: 128 MiB physical
        return 100 * 1024 * 1024
    return 52 * 1024 * 1024                       # v7x: 64 MiB physical


def _pick_block_rows(n_rows, bytes_per_row, stream_budget):
    """Rows per grid step: as large as double-buffered x+out tiles allow, but
    aim for >= 8 row blocks (>= 3-4 per v7x TensorCore) when there is enough
    work so the BlockSpec pipeline can prefetch/write back while computing."""
    if n_rows <= 8:
        return n_rows                              # block == full array dim
    cap = max(8, int(stream_budget) // (2 * bytes_per_row))
    r = min(n_rows, cap, 8192)
    if n_rows >= 8 * 512:
        r = min(r, pl.cdiv(n_rows, 8))             # >= 8 blocks, blocks >= 512 rows
    elif n_rows > 16:
        r = min(r, pl.cdiv(n_rows, 2))             # at least split across 2 cores
    return max(8, (r // 8) * 8)


def _blocked_kernel(x_ref, m_ref, b_ref, o_ref):
    # x_ref: (R, 2H)   lane = h*2 + f       (H a multiple of 128)
    # m_ref: (256,512) constant h-block matrix, reused for every h block
    # b_ref: (1, 512)  bias row, lane = o*128 + h
    # o_ref: (R, 4H)   lane = o*H + h
    h_total = o_ref.shape[1] // OUT_FEATURES
    for hb in range(h_total // HBLK):              # static unroll over h blocks
        xb = x_ref[:, hb * IN_FEATURES * HBLK:(hb + 1) * IN_FEATURES * HBLK]
        acc = jnp.dot(xb, m_ref[...], preferred_element_type=jnp.float32)
        acc = (acc + b_ref[...]).astype(o_ref.dtype)
        for o in range(OUT_FEATURES):              # lane-aligned 128-wide stores
            dst = o * h_total + hb * HBLK
            o_ref[:, dst:dst + HBLK] = acc[:, o * HBLK:(o + 1) * HBLK]


def _dense_kernel(x_ref, m_ref, b_ref, o_ref):
    # Small-H path: one dense (possibly block-diagonal, row-folded) matmul.
    acc = jnp.dot(x_ref[...], m_ref[...], preferred_element_type=jnp.float32)
    o_ref[...] = (acc + b_ref[...]).astype(o_ref.dtype)


def _run(kernel, x2d, m, b_row, out_width):
    n, in_width = x2d.shape
    itemsize = jnp.dtype(x2d.dtype).itemsize
    limit = _vmem_limit_bytes()
    const_bytes = 2 * itemsize * (m.size + b_row.size)     # double-buffered consts
    budget = max(1 << 20, limit - const_bytes - (4 << 20))  # headroom for scratch
    r = _pick_block_rows(n, itemsize * (in_width + out_width), budget)

    return pl.pallas_call(
        kernel,
        out_shape=jax.ShapeDtypeStruct((n, out_width), x2d.dtype),
        grid=(pl.cdiv(n, r),),
        in_specs=[
            pl.BlockSpec((r, in_width), lambda i: (i, 0)),
            # Constant index maps -> fetched into VMEM once, reused every step.
            pl.BlockSpec(m.shape, lambda i: (0, 0)),
            pl.BlockSpec(b_row.shape, lambda i: (0, 0)),
        ],
        out_specs=pl.BlockSpec((r, out_width), lambda i: (i, 0)),
        compiler_params=pltpu.CompilerParams(
            dimension_semantics=("parallel",),
            vmem_limit_bytes=limit),
        cost_estimate=pl.CostEstimate(
            flops=2 * n * in_width * m.shape[1],
            transcendentals=0,
            bytes_accessed=itemsize * (n * (in_width + out_width)
                                       + m.size + b_row.size)),
    )(x2d, m, b_row)


def model_forward(x, weight, bias):
    """x: (B, C, H, 2) -> (B, C, 4, H) == F.linear(x, W, b).permute(0,1,3,2)."""
    B, C, H, F = x.shape
    assert F == IN_FEATURES
    N = B * C
    dtype = x.dtype

    if H % HBLK == 0:
        h_run, x_run = H, x
    elif H > HBLK:
        # Pad H to a multiple of 128 (cheap XLA pad + final slice) so the O(1)
        # blocked constant is used instead of a 32*H^2-byte dense matrix.
        h_run = pl.cdiv(H, HBLK) * HBLK
        x_run = jnp.pad(x, ((0, 0), (0, 0), (0, h_run - H), (0, 0)))
    else:
        h_run = 0                                   # small-H dense path below

    if h_run:
        x2d = x_run.reshape(N, IN_FEATURES * h_run)          # free view
        m_blk = _fused_matrix(weight, HBLK, dtype)            # (256, 512), O(1)
        b_blk = jnp.repeat(bias.astype(dtype), HBLK).reshape(1, OUT_FEATURES * HBLK)
        out2d = _run(_blocked_kernel, x2d, m_blk, b_blk, OUT_FEATURES * h_run)
        out = out2d.reshape(B, C, OUT_FEATURES, h_run)        # free view
        return out[..., :H] if h_run != H else out

    # ---- small-H path (H < 128): dense fused M; fold G rows into the lane
    # dimension so output rows are >= 128 lanes (unmasked, lane-dense stores).
    in_w = IN_FEATURES * H
    out_w = OUT_FEATURES * H
    G = 1 if out_w >= 128 else 128 // math.gcd(out_w, 128)
    n_pad = pl.cdiv(N, G) * G

    x2d = x.reshape(N, in_w)
    if n_pad != N:
        x2d = jnp.pad(x2d, ((0, n_pad - N), (0, 0)))
    xf = x2d.reshape(n_pad // G, G * in_w)                    # free view

    m0 = _fused_matrix(weight, H, dtype)                      # (2H, 4H), tiny
    b0 = jnp.repeat(bias.astype(dtype), H)                    # (4H,)
    if G > 1:
        m = jnp.kron(jnp.eye(G, dtype=dtype), m0)             # block-diagonal
        b_row = jnp.tile(b0, G).reshape(1, G * out_w)
    else:
        m, b_row = m0, b0.reshape(1, out_w)

    outf = _run(_dense_kernel, xf, m, b_row, G * out_w)
    out2d = outf.reshape(n_pad, out_w)[:N]
    return out2d.reshape(B, C, OUT_FEATURES, H)


def init_params(key):
    # nn.Linear(2, 4)-style init: U(-1/sqrt(in), 1/sqrt(in)).
    kw, kb = jax.random.split(key)
    bound = 1.0 / math.sqrt(IN_FEATURES)
    weight = jax.random.uniform(kw, (OUT_FEATURES, IN_FEATURES),
                                jnp.float32, -bound, bound)
    bias = jax.random.uniform(kb, (OUT_FEATURES,), jnp.float32, -bound, bound)
    return weight, bias


def _reference(x, weight, bias):
    lin = jnp.einsum("bchf,of->bcho", x, weight,
                     precision=jax.lax.Precision.HIGHEST) + bias   # F.linear
    return jnp.transpose(lin, (0, 1, 3, 2))                        # permute(0,1,3,2)


if __name__ == "__main__":
    key = jax.random.PRNGKey(0)
    k_params, *k_xs = jax.random.split(key, 4)
    weight, bias = init_params(k_params)
    fwd = jax.jit(model_forward)

    # Small shapes exercising both code paths:
    #   (2, 4, 16, 2)  -> small-H row-folded dense path
    #   (2, 3, 128, 2) -> blocked path, 1 h-block
    #   (1, 2, 256, 2) -> blocked path, 2 h-blocks
    shapes = [(2, 4, 16), (2, 3, 128), (1, 2, 256)]
    for k, (B, C, H) in zip(k_xs, shapes):
        x = jax.random.normal(k, (B, C, H, IN_FEATURES), jnp.float32)
        out = jax.block_until_ready(fwd(x, weight, bias))
        ref = _reference(x, weight, bias)
        assert out.shape == ref.shape == (B, C, OUT_FEATURES, H)
        assert jnp.allclose(out, ref, atol=1e-4, rtol=1e-4), (B, C, H)

    print("KERNEL_OK")
</pallas_src>

<mosaic_0001>
module attributes {stable_mosaic.version = 11 : i64} {
  func.func @_dense_kernel(%arg0: i32, %arg1: memref<4x64xf32, #tpu.memory_space<vmem>>, %arg2: memref<64x128xf32, #tpu.memory_space<vmem>>, %arg3: memref<1x128xf32, #tpu.memory_space<vmem>>, %arg4: memref<4x128xf32, #tpu.memory_space<vmem>>) attributes {dimension_semantics = [#tpu.dimension_semantics<parallel>], iteration_bounds = array<i64: 1>, scalar_prefetch = 0 : i64, scratch_operands = 0 : i64, tpu.core_type = #tpu.core_type<tc>, window_params = [{transform_indices = @transform_0, window_bounds = array<i64: 4, 64>}, {pipeline_mode = #tpu.pipeline_mode<synchronous>, transform_indices = @transform_1, window_bounds = array<i64: 64, 128>}, {pipeline_mode = #tpu.pipeline_mode<synchronous>, transform_indices = @transform_2, window_bounds = array<i64: 1, 128>}, {transform_indices = @transform_3, window_bounds = array<i64: 4, 128>}]} {
    %c0 = arith.constant 0 : index
    %c0_0 = arith.constant 0 : index
    %0 = vector.load %arg1[%c0, %c0_0] : memref<4x64xf32, #tpu.memory_space<vmem>>, vector<4x64xf32>
    %c0_1 = arith.constant 0 : index
    %c0_2 = arith.constant 0 : index
    %1 = vector.load %arg2[%c0_1, %c0_2] : memref<64x128xf32, #tpu.memory_space<vmem>>, vector<64x128xf32>
    %cst = arith.constant dense<0.000000e+00> : vector<4x128xf32>
    %2 = tpu.matmul %0, %1, %cst {dimension_numbers = #tpu.dot_dimension_numbers<[1], [0], [0], [1], [0, 0, 1, 1], [], []>} : vector<4x64xf32>, vector<64x128xf32>, vector<4x128xf32> -> vector<4x128xf32>
    %c0_3 = arith.constant 0 : index
    %c0_4 = arith.constant 0 : index
    %3 = vector.load %arg3[%c0_3, %c0_4] : memref<1x128xf32, #tpu.memory_space<vmem>>, vector<1x128xf32>
    %4 = vector.broadcast %3 : vector<1x128xf32> to vector<4x128xf32>
    %5 = arith.addf %2, %4 : vector<4x128xf32>
    %c0_5 = arith.constant 0 : index
    %c0_6 = arith.constant 0 : index
    %6 = vector.load %arg4[%c0_5, %c0_6] : memref<4x128xf32, #tpu.memory_space<vmem>>, vector<4x128xf32>
    tpu.vector_store %arg4[%c0_5, %c0_6], %5 {strides = array<i32>} : memref<4x128xf32, #tpu.memory_space<vmem>>, vector<4x128xf32>,
    return
  }
  func.func @transform_0(%arg0: i32) -> (i32, i32) {
    %c0_i32 = arith.constant 0 : i32
    %c0_i32_0 = arith.constant 0 : i32
    return %arg0, %c0_i32 : i32, i32
  }
  func.func @transform_1(%arg0: i32) -> (i32, i32) {
    %c0_i32 = arith.constant 0 : i32
    %c0_i32_0 = arith.constant 0 : i32
    %c0_i32_1 = arith.constant 0 : i32
    return %c0_i32, %c0_i32_0 : i32, i32
  }
  func.func @transform_2(%arg0: i32) -> (i32, i32) {
    %c0_i32 = arith.constant 0 : i32
    %c0_i32_0 = arith.constant 0 : i32
    %c0_i32_1 = arith.constant 0 : i32
    return %c0_i32, %c0_i32_0 : i32, i32
  }
  func.func @transform_3(%arg0: i32) -> (i32, i32) {
    %c0_i32 = arith.constant 0 : i32
    %c0_i32_0 = arith.constant 0 : i32
    return %arg0, %c0_i32 : i32, i32
  }
}

</mosaic_0001>

<llo_original>
// kernel: tile.5
$region0: #{tile.5}
  %s0 = inlined_call_operand.vmem [shape: f32[4,16], index: 0, kind: input, shape index: {}]
  %s1 = inlined_call_operand.vmem [shape: f32[64], index: 1, kind: output, shape index: {}]
  $region1: #{tile.5} parent=0
    #allocation0 [shape = 'u8[4096]{0}', space=vmem, size = 0x1000, scoped, tag = 'scoped mem for output reshape']
    #allocation1 [shape = 'u8[4096]{0}', space=vmem, size = 0x1000, scoped, tag = 'scoped mem for input reshape']
    %s3 = ssub.s32 16, 1
    %v4 = vld [vmem:[%s0] sm:%s3]
    %5 = vst [vmem:[#allocation1] sm:%s3] %v4
    %v6 = vld [vmem:[#allocation1] sm:$0x1]
    %vm7 = vcmask 130048
    %8 = vst.msk [vmem:[#allocation0] sm:$0x1] %vm7, %v6
    %s9 = scalar_lea.vmem [#allocation1], 3
    %v10 = vld [vmem:[%s9] sm:$0x1]
    %11 = vrot.lane.b32.xlu0 %v10, 48
    %v12 = vpop.permute.xlu0 %11
    %vm13 = vcmask 523648
    %14 = vst.msk [vmem:[#allocation0] sm:$0x1] %vm13, %v12
    %s15 = scalar_lea.vmem [#allocation1], 2
    %v16 = vld [vmem:[%s15] sm:$0x1]
    %17 = vrot.lane.b32.xlu0 %v16, 32
    %v18 = vpop.permute.xlu0 %17
    %vm19 = vcmask 392448
    %20 = vst.msk [vmem:[#allocation0] sm:$0x1] %vm19, %v18
    %s21 = scalar_lea.vmem [#allocation1], 1
    %v22 = vld [vmem:[%s21] sm:$0x1]
    %23 = vrot.lane.b32.xlu0 %v22, 16
    %v24 = vpop.permute.xlu0 %23
    %vm25 = vcmask 261248
    %26 = vst.msk [vmem:[#allocation0] sm:$0x1] %vm25, %v24
    %s28 = ssub.s32 2, 1
    %v29 = vld [vmem:[#allocation0] sm:%s28]
    %s31 = ssub.s32 2, 1
    %32 = vst [vmem:[%s1] sm:%s31] %v29

// kernel: tile.6
$region0: #{tile.6}
  #allocation0 [shape = 's32[1]{0}', space=sflag, size = 0x4, scoped, tag = 'scoped memory for tile.6']
  %s0 = inlined_call_operand.vmem [shape: f32[64], index: 0, kind: input, shape index: {}]
  %s1 = inlined_call_operand.vmem [shape: f32[2,64], index: 1, kind: output, shape index: {}]
  // Predicated region
  $region2: #{tile.6} parent=0 // pred_check
    _
  $region3: #{tile.6} parent=0 // pred_check_branch
    %3 = sbr.rel (0) target = $region5
  $region4: #{tile.6} parent=0 // pred_region
    _
  $region5: #{tile.6} parent=0 // pred_fallthru
    _
  %v4 = vld [vmem:[%s0] ss:$0 sm:$0xff]
  %5 = vst [vmem:[%s1] sm:$0x3] %v4

// kernel: tile.7
$region0: #{tile.7}
  %s0 = inlined_call_operand.vmem [shape: f32[2,64], index: 0, kind: input, shape index: {}]
  %s1 = inlined_call_operand.vmem [shape: f32[1,128], index: 1, kind: output, shape index: {}]
  $region1: #{tile.7} parent=0
    #allocation0 [shape = 'u8[4096]{0}', space=vmem, size = 0x1000, scoped, tag = 'scoped mem for output reshape']
    #allocation1 [shape = 'u8[4096]{0}', space=vmem, size = 0x1000, scoped, tag = 'scoped mem for input reshape']
    %s3 = ssub.s32 4, 1
    %v4 = vld [vmem:[%s0] sm:%s3]
    %5 = vst [vmem:[#allocation1] sm:%s3] %v4
    %v6 = vld [vmem:[#allocation1] sm:$0x1]
    %vm7 = vcmask 523264
    %8 = vst.msk [vmem:[#allocation0] sm:$0x1] %vm7, %v6
    %s9 = scalar_lea.vmem [#allocation1], 1
    %v10 = vld [vmem:[%s9] sm:$0x1]
    %11 = vrot.lane.b32.xlu0 %v10, 64
    %v12 = vpop.permute.xlu0 %11
    %vm13 = vcmask 1048064
    %14 = vst.msk [vmem:[#allocation0] sm:$0x1] %vm13, %v12
    %s16 = ssub.s32 2, 1
    %v17 = vld [vmem:[#allocation0] sm:%s16]
    %s19 = ssub.s32 2, 1
    %20 = vst [vmem:[%s1] sm:%s19] %v17

// kernel: model_forward.1
$region0: #{model_forward.1}
  #allocation0 [shape = 'u32[]', space=smem, size = 0x4, offset = 0x4, fixed_abs, tag = 'smem constant byte address 0x4 - core index']
  #allocation1 [shape = 'u32[72,128]{1,0:T(1,128)}', space=vmem, size = 0x9000, scoped, tag = 'internal scratch']
  %s0 = inlined_call_operand.vmem [shape: f32[4,64], index: 0, kind: input, shape index: {}]
  %s1 = inlined_call_operand.vmem [shape: f32[64,128], index: 1, kind: input, shape index: {}]
  %s2 = inlined_call_operand.vmem [shape: f32[1,128], index: 2, kind: input, shape index: {}]
  %s3 = inlined_call_operand.vmem [shape: f32[4,128], index: 3, kind: output, shape index: {}]
  %s4 = sld [smem:[#allocation0]]
  $region22: #{model_forward.1} parent=0
    _
  %s6 = ssub.s32 1, %s4
  %s7 = scalar_select 0, %s6, %s4
  // Predicated region
  $region2: #{model_forward.1} parent=0 // pred_check
    _
  $region3: #{model_forward.1} parent=0 // pred_check_branch
    %9 = sbr.rel (0) target = $region5
  $region4: #{model_forward.1} parent=0 // pred_region
    _
  $region5: #{model_forward.1} parent=0 // pred_fallthru
    _
  // Predicated region
  $region6: #{model_forward.1} parent=0 // pred_check
    _
  $region7: #{model_forward.1} parent=0 // pred_check_branch
    %11 = sbr.rel (0) target = $region9
  $region8: #{model_forward.1} parent=0 // pred_region
    _
  $region9: #{model_forward.1} parent=0 // pred_fallthru
    _
  // Predicated region
  $region10: #{model_forward.1} parent=0 // pred_check
    _
  $region11: #{model_forward.1} parent=0 // pred_check_branch
    %13 = sbr.rel (0) target = $region13
  $region12: #{model_forward.1} parent=0 // pred_region
    _
  $region13: #{model_forward.1} parent=0 // pred_fallthru
    _
  %v14 = vld [vmem:[%s0] sm:$0xf]
  %v15 = vld [vmem:[%s1] sm:$0xff]
  %v16 = vld [vmem:[%s1 + $0x8] sm:$0xff]
  %v17 = vld [vmem:[%s1 + $0x10] sm:$0xff]
  %v18 = vld [vmem:[%s1 + $0x18] sm:$0xff]
  %v19 = vld [vmem:[%s1 + $0x20] sm:$0xff]
  %v20 = vld [vmem:[%s1 + $0x28] sm:$0xff]
  %v21 = vld [vmem:[%s1 + $0x30] sm:$0xff]
  %v22 = vld [vmem:[%s1 + $0x38] sm:$0xff]
  %v23 = vld [vmem:[%s2] sm:$0x1]
  %v25 = vperm.slane %v23, 0
  %vm27 = vcmask 523264
  %v29 = vsel %vm27, %v14, 0
  %31 = vmatpush.msra.mxu0 0.0
  %32 = vmatpush.msra.mxu0 0.0
  %33 = vmatpush.msra.mxu0 0.0
  %34 = vmatpush.msra.mxu0 0.0
  %35 = vmatpush.msra.mxu0 0.0
  %36 = vmatpush.msra.mxu0 0.0
  %37 = vmatpush.msra.mxu0 0.0
  %38 = vmatpush.msra.mxu0 0.0
  %39 = vmatpush.msra.mxu0 %v22
  %40 = vmatpush.msra.mxu0 %v21
  %41 = vmatpush.msra.mxu0 %v20
  %42 = vmatpush.msra.mxu0 %v19
  %43 = vmatpush.msra.mxu0 %v18
  %44 = vmatpush.msra.mxu0 %v17
  %45 = vmatpush.msra.mxu0 %v16
  %46 = vmatpush.msra.mxu0 %v15
  %47 = vmatmul.f32.gmra.mxu0 %v29
  %v48 = vpop.f32.mrf.mxu0
  %v49 = vadd.f32 %v25, %v48
  %50 = vdwg.mxu0
  %51 = vst [vmem:[%s3] sm:$0xf] %v49
  // Predicated region
  $region14: #{model_forward.1} parent=0 // pred_check
    _
  $region15: #{model_forward.1} parent=0 // pred_check_branch
    %53 = sbr.rel (0) target = $region17
  $region16: #{model_forward.1} parent=0 // pred_region
    _
  $region17: #{model_forward.1} parent=0 // pred_fallthru
    _
  // Predicated region
  $region18: #{model_forward.1} parent=0 // pred_check
    _
  $region19: #{model_forward.1} parent=0 // pred_check_branch
    %55 = sbr.rel (0) target = $region21
  $region20: #{model_forward.1} parent=0 // pred_region
    _
  $region21: #{model_forward.1} parent=0 // pred_fallthru
    _

</llo_original>
